<compile_context>
chip_gen: v7x
topology: tpu7x:2x2x1
jax: 0.10.0
libtpu: 0.0.40
codegen_flags: <defaults>
</compile_context>

<pallas_src>
import jax
import jax.numpy as jnp
from jax.experimental import pallas as pl
from jax.experimental.pallas import tpu as pltpu


def _round_up(x, m):
    return ((x + m - 1) // m) * m


def _hypernet_kernel(z_ref, w_ref, b_ref, out_ref):
    # out_tile = Z @ W_tile + b_tile.  Z/W are bf16 operands, MXU accumulates
    # in f32 (preferred_element_type), bias add in f32.
    acc = jnp.dot(z_ref[...], w_ref[...], preferred_element_type=jnp.float32)
    out_ref[...] = (acc + b_ref[...]).astype(out_ref.dtype)


def _plan(z_num, z_dim, out_dim):
    """Static tiling/padding plan (computed once, not per call)."""
    # Contraction dim: only bf16 sublane-packing alignment (16), not 128.
    z_dim_p = _round_up(z_dim, 16)
    out_dim_128 = _round_up(out_dim, 128)

    # Lane tile: as wide as VMEM comfortably allows (big unmasked DMAs, fewer
    # per-grid-step overheads), capped at 2048.
    w_tile_budget = 8 * 1024 * 1024  # double-buffered bf16 W tile budget
    max_tn = max(128, (w_tile_budget // (2 * 2 * z_dim_p)) // 128 * 128)
    tn = min(out_dim_128, 2048, max_tn)
    # v7x has 2 TensorCores; keep >= 2 "parallel" grid steps when possible so
    # the out_dim axis actually spans both cores.
    if out_dim_128 // tn < 2 and out_dim_128 >= 256:
        tn = min(tn, max(128, (out_dim_128 // 2) // 128 * 128))
    out_dim_p = _round_up(out_dim_128, tn)
    grid = (out_dim_p // tn,)

    # Explicit VMEM budget (double-buffered tiles) -- tiny even at tn=2048,
    # so there is ample headroom under v7x's 64 MiB/TC physical VMEM.
    vmem_bytes = (
        2 * z_dim_p * tn * 2        # W tile (bf16), double-buffered
        + 2 * tn * 4                # bias tile (f32)
        + 2 * z_num * tn * 4        # output tile (f32)
        + 2 * z_num * z_dim_p * 2   # Z (bf16, effectively resident)
    )
    vmem_limit = int(min(max(4 * vmem_bytes, 32 * 1024 * 1024),
                         48 * 1024 * 1024))

    return dict(z_num=z_num, z_dim=z_dim, out_dim=out_dim,
                z_dim_p=z_dim_p, out_dim_p=out_dim_p, tn=tn, grid=grid,
                vmem_limit=vmem_limit)


def prepare_params(z_stack, w, b, plan):
    """One-time parameter-side prep: bf16 cast + minimal alignment padding.

    This is NOT part of the per-forward path; in a real model these arrays
    are stored in this form once at parameter-conversion time.
    """
    z_num, z_dim = plan["z_num"], plan["z_dim"]
    out_dim = plan["out_dim"]
    z_dim_p, out_dim_p = plan["z_dim_p"], plan["out_dim_p"]

    zp = z_stack.astype(jnp.bfloat16)
    if z_dim_p != z_dim:
        zp = jnp.pad(zp, ((0, 0), (0, z_dim_p - z_dim)))

    wp = w.astype(jnp.bfloat16)
    if z_dim_p != z_dim or out_dim_p != out_dim:
        wp = jnp.pad(wp, ((0, z_dim_p - z_dim), (0, out_dim_p - out_dim)))

    bp = b.astype(jnp.float32)
    if out_dim_p != out_dim:
        bp = jnp.pad(bp, ((0, 0), (0, out_dim_p - out_dim)))

    return zp, wp, bp


def build_embedding_forward(z_num, z_dim, out_dim):
    """Returns (plan, jitted forward(zp, wp, bp) -> (z_num*out_dim,) f32)."""
    plan = _plan(z_num, z_dim, out_dim)
    z_dim_p = plan["z_dim_p"]
    out_dim_p = plan["out_dim_p"]
    tn = plan["tn"]
    grid = plan["grid"]
    vmem_limit = plan["vmem_limit"]

    cost = pl.CostEstimate(
        flops=2 * z_num * z_dim_p * out_dim_p,
        transcendentals=0,
        bytes_accessed=(z_num * z_dim_p * 2      # Z (bf16)
                        + z_dim_p * out_dim_p * 2  # W (bf16)
                        + out_dim_p * 4            # bias (f32)
                        + z_num * out_dim_p * 4),  # output (f32)
    )

    def forward(zp, wp, bp):
        out2d = pl.pallas_call(
            _hypernet_kernel,
            out_shape=jax.ShapeDtypeStruct((z_num, out_dim_p), jnp.float32),
            grid=grid,
            in_specs=[
                # Z resident: block == full (tiny) array, no 128-pad needed.
                pl.BlockSpec((z_num, z_dim_p), lambda j: (0, 0)),
                # W streamed lane-dense along out_dim.
                pl.BlockSpec((z_dim_p, tn), lambda j: (0, j)),
                # Bias tile.
                pl.BlockSpec((1, tn), lambda j: (0, j)),
            ],
            # Output rows unpadded (sublane dim == full array dim) so no
            # post-kernel row slice; lane dim stays a multiple of 128.
            out_specs=pl.BlockSpec((z_num, tn), lambda j: (0, j)),
            compiler_params=pltpu.CompilerParams(
                dimension_semantics=("parallel",),
                vmem_limit_bytes=vmem_limit,
            ),
            cost_estimate=cost,
        )(zp, wp, bp)

        if out_dim_p != out_dim:
            out2d = out2d[:, :out_dim]
        # torch.cat of 1-D outputs == row-major flatten; with no remaining
        # padding this reshape is metadata-only.
        return out2d.reshape(z_num * out_dim)

    return plan, jax.jit(forward)


if __name__ == "__main__":
    # Small shapes consistent with the module: z_num embeddings of z_dim=64;
    # out_dim=1024 exercises a multi-tile grid (tn=512 -> 2 parallel steps).
    z_num = 4
    z_dim = 64
    out_dim = 1024

    key = jax.random.PRNGKey(0)
    k_z, k_w, k_b = jax.random.split(key, 3)

    # Deterministic parameter init mirroring torch.fmod(torch.randn(z_dim), 2)
    z_stack = jnp.fmod(jax.random.normal(k_z, (z_num, z_dim), jnp.float32), 2.0)
    w = jax.random.normal(k_w, (z_dim, out_dim), jnp.float32) * 0.02
    b = 0.01 * jax.random.normal(k_b, (1, out_dim), jnp.float32)

    plan, forward = build_embedding_forward(z_num, z_dim, out_dim)
    # One-time parameter-side prep (bf16 cast + alignment padding).
    zp, wp, bp = prepare_params(z_stack, w, b, plan)

    out = forward(zp, wp, bp)
    jax.block_until_ready(out)

    # Reference 1: same bf16-operand / f32-accumulate math in plain JAX.
    ref_bf16 = (
        jnp.dot(
            z_stack.astype(jnp.bfloat16),
            w.astype(jnp.bfloat16),
            preferred_element_type=jnp.float32,
        )
        + b
    ).reshape(-1)
    # Reference 2: full f32 math (looser tolerance for bf16 operand rounding).
    ref_f32 = (z_stack @ w + b).reshape(-1)

    assert out.shape == (z_num * out_dim,)
    assert jnp.allclose(out, ref_bf16, atol=1e-3, rtol=1e-3)
    assert jnp.allclose(out, ref_f32, atol=3e-2, rtol=3e-2)

    print("KERNEL_OK")
</pallas_src>

<mosaic_0001>
module attributes {stable_mosaic.version = 11 : i64} {
  func.func @_hypernet_kernel(%arg0: i32, %arg1: memref<4x64xbf16, #tpu.memory_space<vmem>>, %arg2: memref<64x512xbf16, #tpu.memory_space<vmem>>, %arg3: memref<1x512xf32, #tpu.memory_space<vmem>>, %arg4: memref<4x512xf32, #tpu.memory_space<vmem>>) attributes {dimension_semantics = [#tpu.dimension_semantics<parallel>], iteration_bounds = array<i64: 2>, scalar_prefetch = 0 : i64, scratch_operands = 0 : i64, tpu.core_type = #tpu.core_type<tc>, window_params = [{pipeline_mode = #tpu.pipeline_mode<synchronous>, transform_indices = @transform_0, window_bounds = array<i64: 4, 64>}, {transform_indices = @transform_1, window_bounds = array<i64: 64, 512>}, {transform_indices = @transform_2, window_bounds = array<i64: 1, 512>}, {transform_indices = @transform_3, window_bounds = array<i64: 4, 512>}]} {
    %c0 = arith.constant 0 : index
    %c0_0 = arith.constant 0 : index
    %0 = vector.load %arg1[%c0, %c0_0] : memref<4x64xbf16, #tpu.memory_space<vmem>>, vector<4x64xbf16>
    %c0_1 = arith.constant 0 : index
    %c0_2 = arith.constant 0 : index
    %1 = vector.load %arg2[%c0_1, %c0_2] : memref<64x512xbf16, #tpu.memory_space<vmem>>, vector<64x512xbf16>
    %cst = arith.constant dense<0.000000e+00> : vector<4x512xf32>
    %2 = tpu.matmul %0, %1, %cst {dimension_numbers = #tpu.dot_dimension_numbers<[1], [0], [0], [1], [0, 0, 1, 1], [], []>} : vector<4x64xbf16>, vector<64x512xbf16>, vector<4x512xf32> -> vector<4x512xf32>
    %c0_3 = arith.constant 0 : index
    %c0_4 = arith.constant 0 : index
    %3 = vector.load %arg3[%c0_3, %c0_4] : memref<1x512xf32, #tpu.memory_space<vmem>>, vector<1x512xf32>
    %4 = vector.broadcast %3 : vector<1x512xf32> to vector<4x512xf32>
    %5 = arith.addf %2, %4 : vector<4x512xf32>
    %c0_5 = arith.constant 0 : index
    %c0_6 = arith.constant 0 : index
    %6 = vector.load %arg4[%c0_5, %c0_6] : memref<4x512xf32, #tpu.memory_space<vmem>>, vector<4x512xf32>
    tpu.vector_store %arg4[%c0_5, %c0_6], %5 {strides = array<i32>} : memref<4x512xf32, #tpu.memory_space<vmem>>, vector<4x512xf32>,
    return
  }
  func.func @transform_0(%arg0: i32) -> (i32, i32) {
    %c0_i32 = arith.constant 0 : i32
    %c0_i32_0 = arith.constant 0 : i32
    %c0_i32_1 = arith.constant 0 : i32
    return %c0_i32, %c0_i32_0 : i32, i32
  }
  func.func @transform_1(%arg0: i32) -> (i32, i32) {
    %c0_i32 = arith.constant 0 : i32
    %c0_i32_0 = arith.constant 0 : i32
    return %c0_i32, %arg0 : i32, i32
  }
  func.func @transform_2(%arg0: i32) -> (i32, i32) {
    %c0_i32 = arith.constant 0 : i32
    %c0_i32_0 = arith.constant 0 : i32
    return %c0_i32, %arg0 : i32, i32
  }
  func.func @transform_3(%arg0: i32) -> (i32, i32) {
    %c0_i32 = arith.constant 0 : i32
    %c0_i32_0 = arith.constant 0 : i32
    return %c0_i32, %arg0 : i32, i32
  }
}

</mosaic_0001>

<llo_original>
// kernel: forward.1
$region0: #{forward.1}
  #allocation0 [shape = 'u32[]', space=smem, size = 0x4, offset = 0x4, fixed_abs, tag = 'smem constant byte address 0x4 - core index']
  #allocation1 [shape = 'u32[144,128]{1,0:T(1,128)}', space=vmem, size = 0x12000, scoped, tag = 'internal scratch']
  %s0 = inlined_call_operand.hbm [shape: bf16[4,64], index: 0, kind: input, shape index: {}]
  %s1 = inlined_call_operand.hbm [shape: bf16[64,1024], index: 1, kind: input, shape index: {}]
  %s2 = inlined_call_operand.hbm [shape: f32[1,1024], index: 2, kind: input, shape index: {}]
  %s3 = inlined_call_operand.vmem [shape: f32[4,1024], index: 3, kind: output, shape index: {}]
  %s4 = sld [smem:[#allocation0]]
  $region57: #{forward.1} parent=0
    _
  %s6 = ssub.s32 1, %s4
  %s7 = scalar_select 0, %s6, %s4
  $region1: #{forward.1} parent=0
    #allocation2 [shape = 'u8[1024]{0}', space=vmem, size = 0x400, scoped, tag = 'input window, operand 0, single buffered']
    #allocation3 [shape = 's32[2]{0}', space=sflag, size = 0x8, scoped, tag = 'scoped memory for forward.1']
    #allocation4 [shape = 'u8[131072]{0}', space=vmem, size = 0x20000, scoped, tag = 'input window, operand 1']
    #allocation5 [shape = 's32[2]{0}', space=sflag, size = 0x8, scoped, tag = 'scoped memory for forward.1']
    #allocation6 [shape = 'u8[4096]{0}', space=vmem, size = 0x1000, scoped, tag = 'input window, operand 2']
    %8 = vsyncpa [#allocation3], 0
    %9 = vsyncpa [#allocation5], 0
    %s10 = scalar_lea.sflag [#allocation5], 1
    %11 = vsyncpa %s10, 0
    loop: start=0, step=1, limit=4
    $region2: #{forward.1} parent=1 // loop_pre_header
      _
    $region3: #{forward.1} parent=1 // loop_header
      %s13 = sphi 0, %s17
      %p14 = scmp.ge.s32.totalorder %s13, 4
      %s21 = sphi 0, %s21
      %s23 = sphi 0, %s21
      %s24 = sphi 0, %s23
      %s38 = sphi 0, %s24
      %s44 = sphi 0, %s46
      %s47 = sphi 0, %s44
      %s48 = sphi 0, %s47
      %s64 = sphi 0, %s48
      %s70 = sphi 0, %s72
      %s73 = sphi 0, %s70
      %s74 = sphi 0, %s73
      %s90 = sphi 0, %s74
      %s96 = sphi 0, %s98
      %s99 = sphi 0, %s96
      %s100 = sphi 0, %s99
      %s116 = sphi 0, %s100
    $region4: #{forward.1} parent=1 // loop_header_branch
      %16 = sbr.rel (%p14) target = $region8
    $region5: #{forward.1} parent=1 // loop_body
      %s18 = ssub.s32 %s13, 1
      %s19 = ssub.s32 %s13, 2
      %s20 = sadd.s32 %s13, 1
      %s22 = sadd.s32 %s21, 1
      %p25 = scmp.eq.s32.totalorder %s13, 1
      %p26 = scmp.ne.s32.totalorder %s21, %s23
      %p27 = scmp.eq.s32.totalorder %s13, 0
      %p28 = por %p26, %p27
      %p29 = scmp.ne.s32.totalorder %s21, %s23
      %p30 = scmp.eq.s32.totalorder %s18, 1
      %p31 = por %p29, %p30
      %p32 = scmp.ne.s32.totalorder %s23, %s24
      %p33 = scmp.eq.s32.totalorder %s18, 0
      %p34 = por %p32, %p33
      %p35 = scmp.ne.s32.totalorder %s23, %s24
      %p36 = scmp.eq.s32.totalorder %s19, 1
      %p37 = por %p35, %p36
      %p39 = scmp.ne.s32.totalorder %s24, %s38
      %p40 = scmp.eq.s32.totalorder %s19, 0
      %p41 = por %p39, %p40
      %s42 = ssub.s32 %s13, %s20
      %p43 = scmp.eq.s32.totalorder %s42, 0
      %s45 = sadd.s32 %s44, 1
      %s46 = scalar_select %p43, %s44, %s45
      %p49 = pneg %p43
      %p50 = scmp.eq.s32.totalorder %s13, 1
      %p51 = por %p49, %p50
      %p52 = scmp.ne.s32.totalorder %s44, %s47
      %p53 = scmp.eq.s32.totalorder %s13, 0
      %p54 = por %p52, %p53
      %p55 = scmp.ne.s32.totalorder %s44, %s47
      %p56 = scmp.eq.s32.totalorder %s18, 1
      %p57 = por %p55, %p56
      %p58 = scmp.ne.s32.totalorder %s47, %s48
      %p59 = scmp.eq.s32.totalorder %s18, 0
      %p60 = por %p58, %p59
      %p61 = scmp.ne.s32.totalorder %s47, %s48
      %p62 = scmp.eq.s32.totalorder %s19, 1
      %p63 = por %p61, %p62
      %p65 = scmp.ne.s32.totalorder %s48, %s64
      %p66 = scmp.eq.s32.totalorder %s19, 0
      %p67 = por %p65, %p66
      %s68 = ssub.s32 %s13, %s20
      %p69 = scmp.eq.s32.totalorder %s68, 0
      %s71 = sadd.s32 %s70, 1
      %s72 = scalar_select %p69, %s70, %s71
      %p75 = pneg %p69
      %p76 = scmp.eq.s32.totalorder %s13, 1
      %p77 = por %p75, %p76
      %p78 = scmp.ne.s32.totalorder %s70, %s73
      %p79 = scmp.eq.s32.totalorder %s13, 0
      %p80 = por %p78, %p79
      %p81 = scmp.ne.s32.totalorder %s70, %s73
      %p82 = scmp.eq.s32.totalorder %s18, 1
      %p83 = por %p81, %p82
      %p84 = scmp.ne.s32.totalorder %s73, %s74
      %p85 = scmp.eq.s32.totalorder %s18, 0
      %p86 = por %p84, %p85
      %p87 = scmp.ne.s32.totalorder %s73, %s74
      %p88 = scmp.eq.s32.totalorder %s19, 1
      %p89 = por %p87, %p88
      %p91 = scmp.ne.s32.totalorder %s74, %s90
      %p92 = scmp.eq.s32.totalorder %s19, 0
      %p93 = por %p91, %p92
      %s94 = ssub.s32 %s13, %s20
      %p95 = scmp.eq.s32.totalorder %s94, 0
      %s97 = sadd.s32 %s96, 1
      %s98 = scalar_select %p95, %s96, %s97
      %p101 = pneg %p95
      %p102 = scmp.eq.s32.totalorder %s13, 1
      %p103 = por %p101, %p102
      %p104 = scmp.ne.s32.totalorder %s96, %s99
      %p105 = scmp.eq.s32.totalorder %s13, 0
      %p106 = por %p104, %p105
      %p107 = scmp.ne.s32.totalorder %s96, %s99
      %p108 = scmp.eq.s32.totalorder %s18, 1
      %p109 = por %p107, %p108
      %p110 = scmp.ne.s32.totalorder %s99, %s100
      %p111 = scmp.eq.s32.totalorder %s18, 0
      %p112 = por %p110, %p111
      %p113 = scmp.ne.s32.totalorder %s99, %s100
      %p114 = scmp.eq.s32.totalorder %s19, 1
      %p115 = por %p113, %p114
      %p117 = scmp.ne.s32.totalorder %s100, %s116
      %p118 = scmp.eq.s32.totalorder %s19, 0
      %p119 = por %p117, %p118
      %p120 = scmp.le.s32.totalorder 1, %s13
      %p121 = scmp.lt.s32.totalorder %s13, 3
      %p122 = pnand %p120, %p121
      %p123 = pneg %p122
      // Predicated region
      $region9: #{forward.1} parent=5 // pred_check
        _
      $region10: #{forward.1} parent=5 // pred_check_branch
        %125 = sbr.rel (%p122) target = $region12
      $region11: #{forward.1} parent=5 // pred_region
        %s126 = ssub.s32 %s13, 1
        // Predicated region
        $region13: #{forward.1} parent=11 // pred_check
          %p127 = pneg %p34
        $region14: #{forward.1} parent=11 // pred_check_branch
          %129 = sbr.rel (%p127) target = $region16
        $region15: #{forward.1} parent=11 // pred_region
          %s131 = ssub.s32 32, 32
          %132 = vsyncadd [#allocation3], %s131
          %s134 = sshll.u32 [#allocation2], 4
          %s135 = int_to_ptr.vmem [resolvable:$true] %s134
          %137 = dma.hbm_to_vmem [thread:$0]  %s0, 32, %s135, [#allocation3]
        $region16: #{forward.1} parent=11 // pred_fallthru
          _
      $region12: #{forward.1} parent=5 // pred_fallthru
        _
      %p138 = scmp.lt.s32.totalorder %s13, 2
      // Predicated region
      $region17: #{forward.1} parent=5 // pred_check
        %p139 = pneg %p138
      $region18: #{forward.1} parent=5 // pred_check_branch
        %141 = sbr.rel (%p139) target = $region20
      $region19: #{forward.1} parent=5 // pred_region
        // Predicated region
        $region21: #{forward.1} parent=19 // pred_check
          %p142 = pneg %p54
        $region22: #{forward.1} parent=19 // pred_check_branch
          %144 = sbr.rel (%p142) target = $region24
        $region23: #{forward.1} parent=19 // pred_region
          %s145 = sand.u32 %s13, 1
          %s146 = scalar_lea.sflag [#allocation5], %s145
          %s147 = sand.u32 %s44, 1
          %s148 = smul.addr %s147, 128
          %s149 = scalar_lea.vmem [#allocation4], %s148
          %s150 = smul.u32 4, %s13
          %s152 = ssub.s32 2048, 2048
          %153 = vsyncadd %s146, %s152
          %s154 = smul.addr %s150, 64
          %s155 = scalar_lea.hbm %s1, %s154
          %s156 = sshll.u32 %s149, 4
          %s157 = int_to_ptr.vmem [resolvable:$true] %s156
          %162 = dma.hbm_to_vmem [thread:$0]  %s155, 2048, %s157, %s146, 512, 256, 16
        $region24: #{forward.1} parent=19 // pred_fallthru
          _
        // Predicated region
        $region25: #{forward.1} parent=19 // pred_check
          %p163 = pneg %p80
        $region26: #{forward.1} parent=19 // pred_check_branch
          %165 = sbr.rel (%p163) target = $region28
        $region27: #{forward.1} parent=19 // pred_region
          %s166 = sand.u32 %s13, 1
          %s167 = scalar_lea.sflag [#allocation5], %s166
          %s168 = sand.u32 %s70, 1
          %s169 = smul.addr %s168, 4
          %s170 = scalar_lea.vmem [#allocation6], %s169
          %s171 = smul.u32 4, %s13
          %s173 = ssub.s32 64, 64
          %174 = vsyncadd %s167, %s173
          %s175 = smul.addr %s171, 16
          %s176 = scalar_lea.hbm %s2, %s175
          %s178 = sshll.u32 %s170, 4
          %s179 = int_to_ptr.vmem [resolvable:$true] %s178
          %181 = dma.hbm_to_vmem [thread:$0]  %s176, 64, %s179, %s167
        $region28: #{forward.1} parent=19 // pred_fallthru
          _
      $region20: #{forward.1} parent=5 // pred_fallthru
        _
      %p182 = scmp.le.s32.totalorder 1, %s13
      %p183 = scmp.lt.s32.totalorder %s13, 3
      %p184 = pnand %p182, %p183
      %p185 = pneg %p184
      // Predicated region
      $region29: #{forward.1} parent=5 // pred_check
        _
      $region30: #{forward.1} parent=5 // pred_check_branch
        %187 = sbr.rel (%p184) target = $region32
      $region31: #{forward.1} parent=5 // pred_region
        %s188 = ssub.s32 %s13, 1
        // Predicated region
        $region33: #{forward.1} parent=31 // pred_check
          %p189 = pneg %p34
        $region34: #{forward.1} parent=31 // pred_check_branch
          %191 = sbr.rel (%p189) target = $region36
        $region35: #{forward.1} parent=31 // pred_region
          %192 = dma.done [#allocation3], 32
        $region36: #{forward.1} parent=31 // pred_fallthru
          _
        %s193 = sand.u32 %s18, 1
        %s194 = scalar_lea.sflag [#allocation5], %s193
        %s195 = sand.u32 %s47, 1
        %s196 = smul.addr %s195, 128
        %s197 = scalar_lea.vmem [#allocation4], %s196
        // Predicated region
        $region37: #{forward.1} parent=31 // pred_check
          %p198 = pneg %p60
        $region38: #{forward.1} parent=31 // pred_check_branch
          %200 = sbr.rel (%p198) target = $region40
        $region39: #{forward.1} parent=31 // pred_region
          %201 = dma.done %s194, 2048
        $region40: #{forward.1} parent=31 // pred_fallthru
          _
        %s202 = sand.u32 %s18, 1
        %s203 = scalar_lea.sflag [#allocation5], %s202
        %s204 = sand.u32 %s73, 1
        %s205 = smul.addr %s204, 4
        %s206 = scalar_lea.vmem [#allocation6], %s205
        // Predicated region
        $region41: #{forward.1} parent=31 // pred_check
          %p207 = pneg %p86
        $region42: #{forward.1} parent=31 // pred_check_branch
          %209 = sbr.rel (%p207) target = $region44
        $region43: #{forward.1} parent=31 // pred_region
          %210 = dma.done %s203, 64
        $region44: #{forward.1} parent=31 // pred_fallthru
          _
        %p211 = pneg %p34
        %p212 = pneg %p31
        %s213 = sand.u32 %s18, 1
        %s214 = scalar_lea.sflag [#allocation5], %s213
        %s215 = sand.u32 %s47, 1
        %s216 = smul.addr %s215, 128
        %s217 = scalar_lea.vmem [#allocation4], %s216
        %p218 = pneg %p60
        %p219 = pneg %p57
        %s220 = sand.u32 %s18, 1
        %s221 = scalar_lea.sflag [#allocation5], %s220
        %s222 = sand.u32 %s73, 1
        %s223 = smul.addr %s222, 4
        %s224 = scalar_lea.vmem [#allocation6], %s223
        %p225 = pneg %p86
        %p226 = pneg %p83
        %p227 = pneg %p112
        %p228 = pneg %p109
        %s229 = smul.u32 4, %s18
        %p230 = scmp.lt.s32.totalorder %s229, 7
        %s231 = scalar_select %p230, %s229, 7
        %s232 = smul.addr %s231, 4
        %s233 = scalar_lea.vmem %s3, %s232
        %s234 = smul.u32 4, %s18
        %s235 = smul.u32 4, %s18
        %s236 = smul.u32 4, %s18
        %p237 = scmp.lt.s32.totalorder %s236, 7
        %s238 = scalar_select %p237, %s236, 7
        %s239 = smul.addr %s238, 4
        %s240 = scalar_lea.vmem %s3, %s239
        %s241 = smul.u32 4, %s18
        %v243 = vld [vmem:[#allocation2] sm:$0x3]
        %v244 = vld [vmem:[%s197] sm:$0xff]
        %v245 = vld [vmem:[%s197 + $0x8] sm:$0xff]
        %v246 = vld [vmem:[%s197 + $0x10] sm:$0xff]
        %v247 = vld [vmem:[%s197 + $0x18] sm:$0xff]
        %v248 = vld [vmem:[%s197 + $0x20] sm:$0xff]
        %v249 = vld [vmem:[%s197 + $0x28] sm:$0xff]
        %v250 = vld [vmem:[%s197 + $0x30] sm:$0xff]
        %v251 = vld [vmem:[%s197 + $0x38] sm:$0xff]
        %v252 = vld [vmem:[%s197 + $0x40] sm:$0xff]
        %v253 = vld [vmem:[%s197 + $0x48] sm:$0xff]
        %v254 = vld [vmem:[%s197 + $0x50] sm:$0xff]
        %v255 = vld [vmem:[%s197 + $0x58] sm:$0xff]
        %v256 = vld [vmem:[%s197 + $0x60] sm:$0xff]
        %v257 = vld [vmem:[%s197 + $0x68] sm:$0xff]
        %v258 = vld [vmem:[%s197 + $0x70] sm:$0xff]
        %v259 = vld [vmem:[%s197 + $0x78] sm:$0xff]
        %v260 = vld [vmem:[%s206] sm:$0xf]
        %v262 = vlaneseq
        %v263 = vshrl.u32 %v262, 7
        %v264 = vsub.s32 0, %v263
        %v265 = vrot.slane %v260, %v264
        %v266 = vlaneseq
        %v267 = vshrl.u32 %v266, 7
        %v268 = vsub.s32 1, %v267
        %v269 = vrot.slane %v260, %v268
        %v270 = vlaneseq
        %v271 = vshrl.u32 %v270, 7
        %v272 = vsub.s32 2, %v271
        %v273 = vrot.slane %v260, %v272
        %v274 = vlaneseq
        %v275 = vshrl.u32 %v274, 7
        %v276 = vsub.s32 3, %v275
        %v277 = vrot.slane %v260, %v276
        %v298 = vunpack.c.l.b16 %v244
        %v299 = vunpack.c.h.b16 %v244
        %v300 = vunpack.c.l.b16 %v245
        %v301 = vunpack.c.h.b16 %v245
        %v302 = vunpack.c.l.b16 %v246
        %v303 = vunpack.c.h.b16 %v246
        %v304 = vunpack.c.l.b16 %v247
        %v305 = vunpack.c.h.b16 %v247
        %v306 = vunpack.c.l.b16 %v248
        %v307 = vunpack.c.h.b16 %v248
        %v308 = vunpack.c.l.b16 %v249
        %v309 = vunpack.c.h.b16 %v249
        %v310 = vunpack.c.l.b16 %v250
        %v311 = vunpack.c.h.b16 %v250
        %v312 = vunpack.c.l.b16 %v251
        %v313 = vunpack.c.h.b16 %v251
        %v314 = vunpack.c.l.b16 %v252
        %v315 = vunpack.c.h.b16 %v252
        %v316 = vunpack.c.l.b16 %v253
        %v317 = vunpack.c.h.b16 %v253
        %v318 = vunpack.c.l.b16 %v254
        %v319 = vunpack.c.h.b16 %v254
        %v320 = vunpack.c.l.b16 %v255
        %v321 = vunpack.c.h.b16 %v255
        %v322 = vunpack.c.l.b16 %v256
        %v323 = vunpack.c.h.b16 %v256
        %v324 = vunpack.c.l.b16 %v257
        %v325 = vunpack.c.h.b16 %v257
        %v326 = vunpack.c.l.b16 %v258
        %v327 = vunpack.c.h.b16 %v258
        %v328 = vunpack.c.l.b16 %v259
        %v329 = vunpack.c.h.b16 %v259
        %v330 = vpack.c.b16 %v302, %v298
        %v331 = vpack.c.b16 %v303, %v299
        %v332 = vpack.c.b16 %v304, %v300
        %v333 = vpack.c.b16 %v305, %v301
        %v334 = vpack.c.b16 %v310, %v306
        %v335 = vpack.c.b16 %v311, %v307
        %v336 = vpack.c.b16 %v312, %v308
        %v337 = vpack.c.b16 %v313, %v309
        %v338 = vpack.c.b16 %v318, %v314
        %v339 = vpack.c.b16 %v319, %v315
        %v340 = vpack.c.b16 %v320, %v316
        %v341 = vpack.c.b16 %v321, %v317
        %v342 = vpack.c.b16 %v326, %v322
        %v343 = vpack.c.b16 %v327, %v323
        %v344 = vpack.c.b16 %v328, %v324
        %v345 = vpack.c.b16 %v329, %v325
        %vm362 = vcmask 523264
        %v364 = vsel %vm362, %v243, 0
        %366 = vmatprep.subr.bf16.mxu0 %v331
        %367 = vmatpush1.bf16.msra.mxu0 %v330
        %368 = vmatprep.subr.bf16.mxu0 %v335
        %369 = vmatpush1.bf16.msra.mxu0 %v334
        %370 = vmatprep.subr.bf16.mxu0 %v339
        %371 = vmatpush1.bf16.msra.mxu0 %v338
        %372 = vmatprep.subr.bf16.mxu0 %v343
        %373 = vmatpush1.bf16.msra.mxu0 %v342
        %374 = vmatprep.subr.bf16.mxu0 0
        %375 = vmatpush1.bf16.msra.mxu0 0
        %376 = vmatprep.subr.bf16.mxu0 0
        %377 = vmatpush1.bf16.msra.mxu0 0
        %378 = vmatprep.subr.bf16.mxu0 0
        %379 = vmatpush1.bf16.msra.mxu0 0
        %380 = vmatprep.subr.bf16.mxu0 0
        %381 = vmatpush1.bf16.msra.mxu0 0
        %382 = vmatprep.subr.bf16.mxu0 0
        %383 = vmatpush1.bf16.msra.mxu0 0
        %384 = vmatprep.subr.bf16.mxu0 0
        %385 = vmatpush1.bf16.msra.mxu0 0
        %386 = vmatprep.subr.bf16.mxu0 0
        %387 = vmatpush1.bf16.msra.mxu0 0
        %388 = vmatprep.subr.bf16.mxu0 0
        %389 = vmatpush1.bf16.msra.mxu0 0
        %390 = vmatprep.subr.bf16.mxu0 0
        %391 = vmatpush1.bf16.msra.mxu0 0
        %392 = vmatprep.subr.bf16.mxu0 0
        %393 = vmatpush1.bf16.msra.mxu0 0
        %394 = vmatprep.subr.bf16.mxu0 0
        %395 = vmatpush1.bf16.msra.mxu0 0
        %396 = vmatprep.subr.bf16.mxu0 0
        %397 = vmatpush1.bf16.msra.mxu0 0
        %398 = vmatprep.mubr.bf16.mxu0 0
        %399 = vmatmul.mubr.bf16.gmra.mrb[0].mxu0 %v364
        %v400 = vpop.f32.mrb[0].mxu0
        %v401 = vadd.f32 %v265, %v400
        %v402 = vpop.f32.mrb[0].mxu0
        %v403 = vadd.f32 %v269, %v402
        %v404 = vpop.f32.mrb[0].mxu0
        %v405 = vpop.f32.mrb[0].mxu0
        %406 = vdwg.mxu0
        %407 = vmatprep.subr.bf16.mxu0 %v333
        %408 = vmatpush1.bf16.msra.mxu0 %v332
        %409 = vmatprep.subr.bf16.mxu0 %v337
        %410 = vmatpush1.bf16.msra.mxu0 %v336
        %411 = vmatprep.subr.bf16.mxu0 %v341
        %412 = vmatpush1.bf16.msra.mxu0 %v340
        %413 = vmatprep.subr.bf16.mxu0 %v345
        %414 = vmatpush1.bf16.msra.mxu0 %v344
        %415 = vmatprep.subr.bf16.mxu0 0
        %416 = vmatpush1.bf16.msra.mxu0 0
        %417 = vmatprep.subr.bf16.mxu0 0
        %418 = vmatpush1.bf16.msra.mxu0 0
        %419 = vmatprep.subr.bf16.mxu0 0
        %420 = vmatpush1.bf16.msra.mxu0 0
        %421 = vmatprep.subr.bf16.mxu0 0
        %422 = vmatpush1.bf16.msra.mxu0 0
        %423 = vmatprep.subr.bf16.mxu0 0
        %424 = vmatpush1.bf16.msra.mxu0 0
        %425 = vmatprep.subr.bf16.mxu0 0
        %426 = vmatpush1.bf16.msra.mxu0 0
        %427 = vmatprep.subr.bf16.mxu0 0
        %428 = vmatpush1.bf16.msra.mxu0 0
        %429 = vmatprep.subr.bf16.mxu0 0
        %430 = vmatpush1.bf16.msra.mxu0 0
        %431 = vmatprep.subr.bf16.mxu0 0
        %432 = vmatpush1.bf16.msra.mxu0 0
        %433 = vmatprep.subr.bf16.mxu0 0
        %434 = vmatpush1.bf16.msra.mxu0 0
        %435 = vmatprep.subr.bf16.mxu0 0
        %436 = vmatpush1.bf16.msra.mxu0 0
        %437 = vmatprep.subr.bf16.mxu0 0
        %438 = vmatpush1.bf16.msra.mxu0 0
        %439 = vmatprep.mubr.bf16.mxu0 0
        %440 = vmatmul.mubr.bf16.gmra.mrb[0].mxu0 %v364
        %v441 = vpop.f32.mrb[0].mxu0
        %v442 = vadd.f32 %v273, %v441
        %v443 = vpop.f32.mrb[0].mxu0
        %v444 = vadd.f32 %v277, %v443
        %v445 = vpop.f32.mrb[0].mxu0
        %v446 = vpop.f32.mrb[0].mxu0
        %447 = vdwg.mxu0
        %v452 = vcombine.low %v401, %v403
        %v453 = vcombine.low %v442, %v444
        %456 = vst [vmem:[%s240] sm:$0xff] %v452
        %457 = vst [vmem:[%s240 + $0x8] sm:$0xff] %v453
        %s458 = smul.u32 4, %s18
        %p459 = scmp.lt.s32.totalorder %s458, 7
        %s460 = scalar_select %p459, %s458, 7
        %s461 = smul.addr %s460, 4
        %s462 = scalar_lea.vmem %s3, %s461
        // Predicated region
        $region45: #{forward.1} parent=31 // pred_check
          %p463 = pneg %p109
        $region46: #{forward.1} parent=31 // pred_check_branch
          %465 = sbr.rel (%p463) target = $region48
        $region47: #{forward.1} parent=31 // pred_region
          %s466 = smul.u32 4, %s18
        $region48: #{forward.1} parent=31 // pred_fallthru
          _
      $region32: #{forward.1} parent=5 // pred_fallthru
        _
      %p467 = scmp.le.s32.totalorder 2, %s13
      // Predicated region
      $region49: #{forward.1} parent=5 // pred_check
        %p468 = pneg %p467
      $region50: #{forward.1} parent=5 // pred_check_branch
        %470 = sbr.rel (%p468) target = $region52
      $region51: #{forward.1} parent=5 // pred_region
        %s471 = ssub.s32 %s13, 2
        // Predicated region
        $region53: #{forward.1} parent=51 // pred_check
          %p472 = pneg %p115
        $region54: #{forward.1} parent=51 // pred_check_branch
          %474 = sbr.rel (%p472) target = $region56
        $region55: #{forward.1} parent=51 // pred_region
          %s475 = smul.u32 4, %s19
          %p476 = scmp.lt.s32.totalorder %s475, 7
          %s477 = scalar_select %p476, %s475, 7
          %s478 = smul.addr %s477, 4
          %s479 = scalar_lea.vmem %s3, %s478
        $region56: #{forward.1} parent=51 // pred_fallthru
          _
      $region52: #{forward.1} parent=5 // pred_fallthru
        _
    $region6: #{forward.1} parent=1 // loop_footer
      %s17 = sadd.s32 1, %s13
    $region7: #{forward.1} parent=1 // loop_footer_branch
      %12 = sbr.rel target = $region3
    $region8: #{forward.1} parent=1 // loop_exit
      _
    %480 = vsyncpa [#allocation3], 1
    %s481 = scalar_lea.sflag [#allocation3], 1
    %482 = vsyncpa %s481, 1
    %483 = vsyncpa [#allocation5], 1
    %s484 = scalar_lea.sflag [#allocation5], 1
    %485 = vsyncpa %s484, 1

</llo_original>
